<compile_context>
chip_gen: v6e
topology: v6e:2x2x1
jax: 0.10.0
libtpu: 0.0.40
codegen_flags: <defaults>
</compile_context>

<pallas_src>
import functools

import jax
import jax.numpy as jnp
from jax.experimental import pallas as pl
from jax.experimental.pallas import tpu as pltpu

STATE_SIZE = 8
HIDDEN = 64
CHUNK = 512      # lanes per inner-loop chunk: h_chunk = (64, 512) f32 = 32 vregs
TB_MAX = 8192    # max batch tile (lanes) per grid step


def critic_kernel(x_ref, w1_ref, b1_ref, w2_ref, b2_ref, out_ref, *, chunk):
    # x_ref : (STATE_SIZE, TB)         -- batch on the lane axis
    # w1_ref: (HIDDEN, STATE_SIZE)     b1_ref: (HIDDEN, 1)     w2_ref: (HIDDEN, 1)
    # b2_ref: (1, 1) scalar in SMEM    out_ref: (1, TB)
    tb = x_ref.shape[1]
    n_chunks = tb // chunk

    # Loop-invariant loads / broadcasts hoisted out of the chunk loop.
    w1 = w1_ref[...]
    b1 = b1_ref[...]
    w2 = w2_ref[...]
    b2 = b2_ref[0, 0]

    def compute(x):
        # fc1 on the MXU (K = 8), f32 accumulate, full f32 contract precision.
        h = jnp.dot(w1, x, preferred_element_type=jnp.float32,
                    precision=jax.lax.Precision.HIGHEST)          # (HIDDEN, chunk)
        h = jnp.maximum(h + b1, 0.0)                              # bias + ReLU (VPU)
        # fc2 as a weighted sublane reduction (VPU multiply + XLU reduce), no MXU.
        return jnp.sum(h * w2, axis=0, keepdims=True) + b2        # (1, chunk)

    if n_chunks == 1:
        out_ref[...] = compute(x_ref[...]).astype(out_ref.dtype)
    else:
        def body(c, carry):
            start = pl.multiple_of(c * chunk, chunk)
            x = x_ref[:, pl.ds(start, chunk)]
            out_ref[:, pl.ds(start, chunk)] = compute(x).astype(out_ref.dtype)
            return carry

        jax.lax.fori_loop(0, n_chunks, body, 0, unroll=2)


def _choose_tile(bp, tb_max):
    """Pick batch tile: >=4 grid steps (large), >=2 (mid), 1 (small batches)."""
    if bp >= 4 * 1024:
        tb = pl.cdiv(bp, 4)
    elif bp >= 2 * 1024:
        tb = pl.cdiv(bp, 2)
    else:
        tb = bp
    tb = min(tb, tb_max)
    if tb > CHUNK:
        tb = CHUNK * pl.cdiv(tb, CHUNK)   # inner chunk loop needs chunk | tb
        chunk = CHUNK
    else:
        tb = 128 * pl.cdiv(tb, 128)
        chunk = tb
    return tb, chunk


def critic_forward(state, w1, b1, w2, b2, *, tb_max=TB_MAX):
    """state: (B, STATE_SIZE) f32.  Returns (B, 1) f32, matching the PyTorch Critic."""
    B, S = state.shape
    assert S == STATE_SIZE

    bp = 128 * pl.cdiv(B, 128)
    tb, chunk = _choose_tile(bp, tb_max)
    bp = tb * pl.cdiv(bp, tb)

    x_t = jnp.pad(state.T, ((0, 0), (0, bp - B)))          # (S, bp), batch on lanes
    w1_t = w1.T                                             # (HIDDEN, S)
    b1_c = b1.reshape(HIDDEN, 1)                            # (HIDDEN, 1)
    w2_c = w2.reshape(HIDDEN, 1)                            # (HIDDEN, 1)
    b2_s = b2.reshape(1, 1)                                 # (1, 1) scalar

    kernel = functools.partial(critic_kernel, chunk=chunk)

    out = pl.pallas_call(
        kernel,
        out_shape=jax.ShapeDtypeStruct((1, bp), jnp.float32),
        grid=(bp // tb,),
        in_specs=[
            pl.BlockSpec((S, tb), lambda i: (0, i)),              # state tile (pipelined)
            pl.BlockSpec((HIDDEN, S), lambda i: (0, 0)),          # w1: VMEM-resident
            pl.BlockSpec((HIDDEN, 1), lambda i: (0, 0)),          # b1: VMEM-resident
            pl.BlockSpec((HIDDEN, 1), lambda i: (0, 0)),          # w2: VMEM-resident
            pl.BlockSpec(memory_space=pltpu.MemorySpace.SMEM),    # b2: scalar in SMEM
        ],
        out_specs=pl.BlockSpec((1, tb), lambda i: (0, i)),        # lane-dense output
        compiler_params=pltpu.CompilerParams(
            dimension_semantics=("parallel",),
        ),
    )(x_t, w1_t, b1_c, w2_c, b2_s)

    # Drop padded batch columns, return (B, 1) like nn.Linear(64, 1).
    return out[0, :B].reshape(B, 1)


def init_params(key):
    # Match nn.Linear default init: U(-1/sqrt(fan_in), 1/sqrt(fan_in))
    k1, k2, k3, k4 = jax.random.split(key, 4)
    bound1 = 1.0 / jnp.sqrt(STATE_SIZE)
    bound2 = 1.0 / jnp.sqrt(HIDDEN)
    w1 = jax.random.uniform(k1, (STATE_SIZE, HIDDEN), jnp.float32, -bound1, bound1)
    b1 = jax.random.uniform(k2, (1, HIDDEN), jnp.float32, -bound1, bound1)
    w2 = jax.random.uniform(k3, (HIDDEN, 1), jnp.float32, -bound2, bound2)
    b2 = jax.random.uniform(k4, (1, 1), jnp.float32, -bound2, bound2)
    return w1, b1, w2, b2


def _reference(state, w1, b1, w2, b2):
    hp = jax.lax.Precision.HIGHEST
    h = jnp.maximum(jnp.dot(state, w1, precision=hp) + b1, 0.0)
    return jnp.dot(h, w2, precision=hp) + b2


if __name__ == "__main__":
    key = jax.random.PRNGKey(0)
    kp, kx, ky = jax.random.split(key, 3)
    w1, b1, w2, b2 = init_params(kp)

    # Small case (batch=8, state_size=8): single grid step, single chunk.
    batch = 8
    state = jax.random.normal(kx, (batch, STATE_SIZE), jnp.float32)
    value = jax.block_until_ready(critic_forward(state, w1, b1, w2, b2))
    ref = _reference(state, w1, b1, w2, b2)
    assert value.shape == (batch, 1)
    assert jnp.allclose(value, ref, atol=1e-5, rtol=1e-5)

    # Larger, non-multiple-of-128 batch: exercises padding, multi-step grid and
    # the in-kernel chunk loop.
    batch2 = 2200
    state2 = jax.random.normal(ky, (batch2, STATE_SIZE), jnp.float32)
    value2 = jax.block_until_ready(critic_forward(state2, w1, b1, w2, b2))
    ref2 = _reference(state2, w1, b1, w2, b2)
    assert value2.shape == (batch2, 1)
    assert jnp.allclose(value2, ref2, atol=1e-5, rtol=1e-5)

    print("KERNEL_OK")
</pallas_src>

<mosaic_0001>
module attributes {stable_mosaic.version = 11 : i64} {
  func.func @critic_kernel(%arg0: i32, %arg1: memref<8x128xf32, #tpu.memory_space<vmem>>, %arg2: memref<64x8xf32, #tpu.memory_space<vmem>>, %arg3: memref<64x1xf32, #tpu.memory_space<vmem>>, %arg4: memref<64x1xf32, #tpu.memory_space<vmem>>, %arg5: memref<1x1xf32, #tpu.memory_space<smem>>, %arg6: memref<1x128xf32, #tpu.memory_space<vmem>>) attributes {dimension_semantics = [#tpu.dimension_semantics<parallel>], iteration_bounds = array<i64: 1>, scalar_prefetch = 0 : i64, scratch_operands = 0 : i64, tpu.core_type = #tpu.core_type<tc>, window_params = [{transform_indices = @transform_0, window_bounds = array<i64: 8, 128>}, {pipeline_mode = #tpu.pipeline_mode<synchronous>, transform_indices = @transform_1, window_bounds = array<i64: 64, 8>}, {pipeline_mode = #tpu.pipeline_mode<synchronous>, transform_indices = @transform_2, window_bounds = array<i64: 64, 1>}, {pipeline_mode = #tpu.pipeline_mode<synchronous>, transform_indices = @transform_3, window_bounds = array<i64: 64, 1>}, {transform_indices = @transform_4, window_bounds = array<i64: 1, 1>}, {transform_indices = @transform_5, window_bounds = array<i64: 1, 128>}]} {
    %c0 = arith.constant 0 : index
    %c0_0 = arith.constant 0 : index
    %0 = vector.load %arg2[%c0, %c0_0] : memref<64x8xf32, #tpu.memory_space<vmem>>, vector<64x8xf32>
    %c0_1 = arith.constant 0 : index
    %c0_2 = arith.constant 0 : index
    %1 = vector.load %arg3[%c0_1, %c0_2] : memref<64x1xf32, #tpu.memory_space<vmem>>, vector<64x1xf32>
    %c0_3 = arith.constant 0 : index
    %c0_4 = arith.constant 0 : index
    %2 = vector.load %arg4[%c0_3, %c0_4] : memref<64x1xf32, #tpu.memory_space<vmem>>, vector<64x1xf32>
    %c0_5 = arith.constant 0 : index
    %c0_6 = arith.constant 0 : index
    %3 = memref.load %arg5[%c0_5, %c0_6] : memref<1x1xf32, #tpu.memory_space<smem>>
    %c0_7 = arith.constant 0 : index
    %c0_8 = arith.constant 0 : index
    %4 = vector.load %arg1[%c0_7, %c0_8] : memref<8x128xf32, #tpu.memory_space<vmem>>, vector<8x128xf32>
    %cst = arith.constant dense<0.000000e+00> : vector<64x128xf32>
    %5 = tpu.matmul %0, %4, %cst {dimension_numbers = #tpu.dot_dimension_numbers<[1], [0], [0], [1], [0, 0, 1, 1], [], []>, precision = #tpu.contract_precision<fp32>} : vector<64x8xf32>, vector<8x128xf32>, vector<64x128xf32> -> vector<64x128xf32>
    %6 = vector.broadcast %1 : vector<64x1xf32> to vector<64x128xf32>
    %7 = arith.addf %5, %6 : vector<64x128xf32>
    %cst_9 = arith.constant 0.000000e+00 : f32
    %8 = vector.broadcast %cst_9 : f32 to vector<64x128xf32>
    %9 = arith.maximumf %7, %8 : vector<64x128xf32>
    %10 = vector.broadcast %2 : vector<64x1xf32> to vector<64x128xf32>
    %11 = arith.mulf %9, %10 : vector<64x128xf32>
    %cst_10 = arith.constant dense<0.000000e+00> : vector<128xf32>
    %12 = vector.multi_reduction <add>, %11, %cst_10 [0] : vector<64x128xf32> to vector<128xf32>
    %13 = vector.shape_cast %12 : vector<128xf32> to vector<1x128xf32>
    %14 = vector.broadcast %3 : f32 to vector<1x128xf32>
    %15 = arith.addf %13, %14 : vector<1x128xf32>
    %c0_11 = arith.constant 0 : index
    %c0_12 = arith.constant 0 : index
    %16 = vector.load %arg6[%c0_11, %c0_12] : memref<1x128xf32, #tpu.memory_space<vmem>>, vector<1x128xf32>
    tpu.vector_store %arg6[%c0_11, %c0_12], %15 {strides = array<i32>} : memref<1x128xf32, #tpu.memory_space<vmem>>, vector<1x128xf32>,
    return
  }
  func.func @transform_0(%arg0: i32) -> (i32, i32) {
    %c0_i32 = arith.constant 0 : i32
    %c0_i32_0 = arith.constant 0 : i32
    return %c0_i32, %arg0 : i32, i32
  }
  func.func @transform_1(%arg0: i32) -> (i32, i32) {
    %c0_i32 = arith.constant 0 : i32
    %c0_i32_0 = arith.constant 0 : i32
    %c0_i32_1 = arith.constant 0 : i32
    return %c0_i32, %c0_i32_0 : i32, i32
  }
  func.func @transform_2(%arg0: i32) -> (i32, i32) {
    %c0_i32 = arith.constant 0 : i32
    %c0_i32_0 = arith.constant 0 : i32
    %c0_i32_1 = arith.constant 0 : i32
    return %c0_i32, %c0_i32_0 : i32, i32
  }
  func.func @transform_3(%arg0: i32) -> (i32, i32) {
    %c0_i32 = arith.constant 0 : i32
    %c0_i32_0 = arith.constant 0 : i32
    %c0_i32_1 = arith.constant 0 : i32
    return %c0_i32, %c0_i32_0 : i32, i32
  }
  func.func @transform_4(%arg0: i32) -> (i32, i32) {
    %c0_i32 = arith.constant 0 : i32
    %c0_i32_0 = arith.constant 0 : i32
    %c0_i32_1 = arith.constant 0 : i32
    return %c0_i32, %c0_i32_0 : i32, i32
  }
  func.func @transform_5(%arg0: i32) -> (i32, i32) {
    %c0_i32 = arith.constant 0 : i32
    %c0_i32_0 = arith.constant 0 : i32
    return %c0_i32, %arg0 : i32, i32
  }
}

</mosaic_0001>

<llo_original>
// kernel: tpu_custom_call.1
$region0: #{tpu_custom_call.1}
  #allocation0 [shape = 'u32[]', space=smem, size = 0x4, offset = 0x4, fixed_abs, tag = 'smem constant byte address 0x4 - core index']
  #allocation1 [shape = 'u32[144,128]{1,0:T(1,128)}', space=vmem, size = 0x12000, scoped, tag = 'internal scratch']
  #allocation2 [shape = 'f32[1,1]{1,0:T(1,128)S(6)}', space=smem, size = 0x200, scoped, tag = 'scoped memory for tpu_custom_call.1']
  %s0 = inlined_call_operand.vmem [shape: f32[8,128], index: 0, kind: input, shape index: {}]
  %s1 = inlined_call_operand.vmem [shape: f32[64,8], index: 1, kind: input, shape index: {}]
  %s2 = inlined_call_operand.vmem [shape: f32[64,1], index: 2, kind: input, shape index: {}]
  %s3 = inlined_call_operand.vmem [shape: f32[64,1], index: 3, kind: input, shape index: {}]
  %s4 = inlined_call_operand.<no memory space> [shape: f32[1,1], index: 4, kind: input, shape index: {}]
  %s5 = inlined_call_operand.hbm [shape: f32[1,128], index: 5, kind: output, shape index: {}]
  %s6 = sld [smem:[#allocation0]]
  $region30: #{tpu_custom_call.1} parent=0
    _
  %s8 = ssub.s32 1, %s6
  %s9 = scalar_select 0, %s8, %s6
  %10 = sst [smem:[#allocation2]] %s4
  $region1: #{tpu_custom_call.1} parent=0
    #allocation3 [shape = 'u8[512]{0}', space=vmem, size = 0x400, scoped, tag = 'output window, operand 0, single buffered']
    #allocation4 [shape = 's32[1]{0}', space=sflag, size = 0x4, scoped, tag = 'scoped memory for tpu_custom_call.1']
    %11 = vsyncpa [#allocation4], 0
    // Predicated region
    $region2: #{tpu_custom_call.1} parent=1 // pred_check
      _
    $region3: #{tpu_custom_call.1} parent=1 // pred_check_branch
      %13 = sbr.rel (0) target = $region5
    $region4: #{tpu_custom_call.1} parent=1 // pred_region
      _
    $region5: #{tpu_custom_call.1} parent=1 // pred_fallthru
      _
    // Predicated region
    $region6: #{tpu_custom_call.1} parent=1 // pred_check
      _
    $region7: #{tpu_custom_call.1} parent=1 // pred_check_branch
      %15 = sbr.rel (0) target = $region9
    $region8: #{tpu_custom_call.1} parent=1 // pred_region
      _
    $region9: #{tpu_custom_call.1} parent=1 // pred_fallthru
      _
    // Predicated region
    $region10: #{tpu_custom_call.1} parent=1 // pred_check
      _
    $region11: #{tpu_custom_call.1} parent=1 // pred_check_branch
      %17 = sbr.rel (0) target = $region13
    $region12: #{tpu_custom_call.1} parent=1 // pred_region
      _
    $region13: #{tpu_custom_call.1} parent=1 // pred_fallthru
      _
    // Predicated region
    $region14: #{tpu_custom_call.1} parent=1 // pred_check
      _
    $region15: #{tpu_custom_call.1} parent=1 // pred_check_branch
      %19 = sbr.rel (0) target = $region17
    $region16: #{tpu_custom_call.1} parent=1 // pred_region
      _
    $region17: #{tpu_custom_call.1} parent=1 // pred_fallthru
      _
    // Predicated region
    $region18: #{tpu_custom_call.1} parent=1 // pred_check
      _
    $region19: #{tpu_custom_call.1} parent=1 // pred_check_branch
      %21 = sbr.rel (0) target = $region21
    $region20: #{tpu_custom_call.1} parent=1 // pred_region
      _
    $region21: #{tpu_custom_call.1} parent=1 // pred_fallthru
      _
    %v22 = vld [vmem:[%s1] sm:$0xff]
    %v23 = vld [vmem:[%s1 + $0x8] sm:$0xff]
    %v24 = vld [vmem:[%s1 + $0x10] sm:$0xff]
    %v25 = vld [vmem:[%s1 + $0x18] sm:$0xff]
    %v26 = vld [vmem:[%s1 + $0x20] sm:$0xff]
    %v27 = vld [vmem:[%s1 + $0x28] sm:$0xff]
    %v28 = vld [vmem:[%s1 + $0x30] sm:$0xff]
    %v29 = vld [vmem:[%s1 + $0x38] sm:$0xff]
    %v30 = vld [vmem:[%s2] sm:$0xff]
    %v31 = vld [vmem:[%s2 + $0x8] sm:$0xff]
    %v32 = vld [vmem:[%s2 + $0x10] sm:$0xff]
    %v33 = vld [vmem:[%s2 + $0x18] sm:$0xff]
    %v34 = vld [vmem:[%s2 + $0x20] sm:$0xff]
    %v35 = vld [vmem:[%s2 + $0x28] sm:$0xff]
    %v36 = vld [vmem:[%s2 + $0x30] sm:$0xff]
    %v37 = vld [vmem:[%s2 + $0x38] sm:$0xff]
    %v38 = vld [vmem:[%s3] sm:$0xff]
    %v39 = vld [vmem:[%s3 + $0x8] sm:$0xff]
    %v40 = vld [vmem:[%s3 + $0x10] sm:$0xff]
    %v41 = vld [vmem:[%s3 + $0x18] sm:$0xff]
    %v42 = vld [vmem:[%s3 + $0x20] sm:$0xff]
    %v43 = vld [vmem:[%s3 + $0x28] sm:$0xff]
    %v44 = vld [vmem:[%s3 + $0x30] sm:$0xff]
    %v45 = vld [vmem:[%s3 + $0x38] sm:$0xff]
    %s46 = sld [smem:[#allocation2]]
    %v47 = vld [vmem:[%s0] sm:$0xff]
    %49 = vset.pattern.permute.xlu0 0
    %50 = vperm.xlu0 %49, %v30
    %v51 = vpop.permute.xlu0 %50
    %54 = vset.pattern.permute.xlu0 0
    %55 = vperm.xlu0 %54, %v31
    %v56 = vpop.permute.xlu0 %55
    %59 = vset.pattern.permute.xlu0 0
    %60 = vperm.xlu0 %59, %v32
    %v61 = vpop.permute.xlu0 %60
    %64 = vset.pattern.permute.xlu0 0
    %65 = vperm.xlu0 %64, %v33
    %v66 = vpop.permute.xlu0 %65
    %69 = vset.pattern.permute.xlu0 0
    %70 = vperm.xlu0 %69, %v34
    %v71 = vpop.permute.xlu0 %70
    %74 = vset.pattern.permute.xlu0 0
    %75 = vperm.xlu0 %74, %v35
    %v76 = vpop.permute.xlu0 %75
    %79 = vset.pattern.permute.xlu0 0
    %80 = vperm.xlu0 %79, %v36
    %v81 = vpop.permute.xlu0 %80
    %84 = vset.pattern.permute.xlu0 0
    %85 = vperm.xlu0 %84, %v37
    %v86 = vpop.permute.xlu0 %85
    %vm88 = vcmask 64512
    %v90 = vsel %vm88, %v22, 0
    %v93 = vsel %vm88, %v23, 0
    %v96 = vsel %vm88, %v24, 0
    %v99 = vsel %vm88, %v25, 0
    %v102 = vsel %vm88, %v26, 0
    %v105 = vsel %vm88, %v27, 0
    %v108 = vsel %vm88, %v28, 0
    %v111 = vsel %vm88, %v29, 0
    %113 = vmatprep.subr.mxu0 0.0
    %114 = vmatpush1.msra.mxu0 0.0
    %115 = vmatprep.subr.mxu0 0.0
    %116 = vmatpush1.msra.mxu0 0.0
    %117 = vmatprep.subr.mxu0 0.0
    %118 = vmatpush1.msra.mxu0 0.0
    %119 = vmatprep.subr.mxu0 0.0
    %120 = vmatpush1.msra.mxu0 0.0
    %121 = vmatprep.subr.mxu0 0.0
    %122 = vmatpush1.msra.mxu0 0.0
    %123 = vmatprep.subr.mxu0 0.0
    %124 = vmatpush1.msra.mxu0 0.0
    %125 = vmatprep.subr.mxu0 0.0
    %126 = vmatpush1.msra.mxu0 0.0
    %127 = vmatprep.subr.mxu0 0.0
    %128 = vmatpush1.msra.mxu0 0.0
    %129 = vmatprep.subr.mxu0 0.0
    %130 = vmatpush1.msra.mxu0 0.0
    %131 = vmatprep.subr.mxu0 0.0
    %132 = vmatpush1.msra.mxu0 0.0
    %133 = vmatprep.subr.mxu0 0.0
    %134 = vmatpush1.msra.mxu0 0.0
    %135 = vmatprep.subr.mxu0 0.0
    %136 = vmatpush1.msra.mxu0 0.0
    %137 = vmatprep.subr.mxu0 0.0
    %138 = vmatpush1.msra.mxu0 0.0
    %139 = vmatprep.subr.mxu0 0.0
    %140 = vmatpush1.msra.mxu0 0.0
    %141 = vmatprep.subr.mxu0 0.0
    %142 = vmatpush1.msra.mxu0 0.0
    %143 = vmatprep.subr.mxu0 0.0
    %v144 = vand.u32 %v47, 4294901760
    %145 = vmatpush1.msra.mxu0 %v144
    %146 = vmatprep.subr.mxu0 0.0
    %147 = vmatpush2.msra.mxu0 0.0
    %148 = vmatprep.subr.mxu0 0.0
    %149 = vmatpush2.msra.mxu0 0.0
    %150 = vmatprep.subr.mxu0 0.0
    %151 = vmatpush2.msra.mxu0 0.0
    %152 = vmatprep.subr.mxu0 0.0
    %153 = vmatpush2.msra.mxu0 0.0
    %154 = vmatprep.subr.mxu0 0.0
    %155 = vmatpush2.msra.mxu0 0.0
    %156 = vmatprep.subr.mxu0 0.0
    %157 = vmatpush2.msra.mxu0 0.0
    %158 = vmatprep.subr.mxu0 0.0
    %159 = vmatpush2.msra.mxu0 0.0
    %160 = vmatprep.subr.mxu0 0.0
    %161 = vmatpush2.msra.mxu0 0.0
    %162 = vmatprep.subr.mxu0 0.0
    %163 = vmatpush2.msra.mxu0 0.0
    %164 = vmatprep.subr.mxu0 0.0
    %165 = vmatpush2.msra.mxu0 0.0
    %166 = vmatprep.subr.mxu0 0.0
    %167 = vmatpush2.msra.mxu0 0.0
    %168 = vmatprep.subr.mxu0 0.0
    %169 = vmatpush2.msra.mxu0 0.0
    %170 = vmatprep.subr.mxu0 0.0
    %171 = vmatpush2.msra.mxu0 0.0
    %172 = vmatprep.subr.mxu0 0.0
    %173 = vmatpush2.msra.mxu0 0.0
    %174 = vmatprep.subr.mxu0 0.0
    %175 = vmatpush2.msra.mxu0 0.0
    %176 = vmatprep.subr.mxu0 0.0
    %177 = vmatpush2.msra.mxu0 0.0
    %178 = vmatprep.mubr.f32.mxu0 0.0
    %v179 = vand.u32 %v90, 4294901760
    %v180 = vsub.f32 %v90, %v179
    %v181 = vand.u32 %v180, 4294901760
    %v182 = vsub.f32 %v180, %v181
    %v183 = vand.u32 %v182, 4294901760
    %184 = vmatmul.mubr.f32.gmra.mxu0 %v183
    %v185 = vpop.f32.mrf.mxu0
    %v186 = vadd.f32 %v51, %v185
    %v187 = vpop.f32.mrf.mxu0
    %188 = vmatprep.mubr.f32.mxu0 0.0
    %v189 = vand.u32 %v93, 4294901760
    %v190 = vsub.f32 %v93, %v189
    %v191 = vand.u32 %v190, 4294901760
    %v192 = vsub.f32 %v190, %v191
    %v193 = vand.u32 %v192, 4294901760
    %194 = vmatmul.mubr.f32.gmra.mxu0 %v193
    %v195 = vpop.f32.mrf.mxu0
    %v196 = vadd.f32 %v56, %v195
    %v197 = vpop.f32.mrf.mxu0
    %198 = vmatprep.mubr.f32.mxu0 0.0
    %v199 = vand.u32 %v96, 4294901760
    %v200 = vsub.f32 %v96, %v199
    %v201 = vand.u32 %v200, 4294901760
    %v202 = vsub.f32 %v200, %v201
    %v203 = vand.u32 %v202, 4294901760
    %204 = vmatmul.mubr.f32.gmra.mxu0 %v203
    %v205 = vpop.f32.mrf.mxu0
    %v206 = vadd.f32 %v61, %v205
    %v207 = vpop.f32.mrf.mxu0
    %208 = vmatprep.mubr.f32.mxu0 0.0
    %v209 = vand.u32 %v99, 4294901760
    %v210 = vsub.f32 %v99, %v209
    %v211 = vand.u32 %v210, 4294901760
    %v212 = vsub.f32 %v210, %v211
    %v213 = vand.u32 %v212, 4294901760
    %214 = vmatmul.mubr.f32.gmra.mxu0 %v213
    %v215 = vpop.f32.mrf.mxu0
    %v216 = vadd.f32 %v66, %v215
    %v217 = vpop.f32.mrf.mxu0
    %218 = vmatprep.mubr.f32.mxu0 0.0
    %v219 = vand.u32 %v102, 4294901760
    %v220 = vsub.f32 %v102, %v219
    %v221 = vand.u32 %v220, 4294901760
    %v222 = vsub.f32 %v220, %v221
    %v223 = vand.u32 %v222, 4294901760
    %224 = vmatmul.mubr.f32.gmra.mxu0 %v223
    %v225 = vpop.f32.mrf.mxu0
    %v226 = vadd.f32 %v71, %v225
    %v227 = vpop.f32.mrf.mxu0
    %228 = vmatprep.mubr.f32.mxu0 0.0
    %v229 = vand.u32 %v105, 4294901760
    %v230 = vsub.f32 %v105, %v229
    %v231 = vand.u32 %v230, 4294901760
    %v232 = vsub.f32 %v230, %v231
    %v233 = vand.u32 %v232, 4294901760
    %234 = vmatmul.mubr.f32.gmra.mxu0 %v233
    %v235 = vpop.f32.mrf.mxu0
    %v236 = vadd.f32 %v76, %v235
    %v237 = vpop.f32.mrf.mxu0
    %238 = vmatprep.mubr.f32.mxu0 0.0
    %v239 = vand.u32 %v108, 4294901760
    %v240 = vsub.f32 %v108, %v239
    %v241 = vand.u32 %v240, 4294901760
    %v242 = vsub.f32 %v240, %v241
    %v243 = vand.u32 %v242, 4294901760
    %244 = vmatmul.mubr.f32.gmra.mxu0 %v243
    %v245 = vpop.f32.mrf.mxu0
    %v246 = vadd.f32 %v81, %v245
    %v247 = vpop.f32.mrf.mxu0
    %248 = vmatprep.mubr.f32.mxu0 0.0
    %v249 = vand.u32 %v111, 4294901760
    %v250 = vsub.f32 %v111, %v249
    %v251 = vand.u32 %v250, 4294901760
    %v252 = vsub.f32 %v250, %v251
    %v253 = vand.u32 %v252, 4294901760
    %254 = vmatmul.mubr.f32.gmra.mxu0 %v253
    %v255 = vpop.f32.mrf.mxu0
    %v256 = vadd.f32 %v86, %v255
    %v257 = vpop.f32.mrf.mxu0
    %258 = vdwg.mxu0
    %259 = vmatprep.subr.mxu0 0.0
    %260 = vmatpush1.msra.mxu0 0.0
    %261 = vmatprep.subr.mxu0 0.0
    %262 = vmatpush1.msra.mxu0 0.0
    %263 = vmatprep.subr.mxu0 0.0
    %264 = vmatpush1.msra.mxu0 0.0
    %265 = vmatprep.subr.mxu0 0.0
    %266 = vmatpush1.msra.mxu0 0.0
    %267 = vmatprep.subr.mxu0 0.0
    %268 = vmatpush1.msra.mxu0 0.0
    %269 = vmatprep.subr.mxu0 0.0
    %270 = vmatpush1.msra.mxu0 0.0
    %271 = vmatprep.subr.mxu0 0.0
    %272 = vmatpush1.msra.mxu0 0.0
    %273 = vmatprep.subr.mxu0 0.0
    %274 = vmatpush1.msra.mxu0 0.0
    %275 = vmatprep.subr.mxu0 0.0
    %276 = vmatpush1.msra.mxu0 0.0
    %277 = vmatprep.subr.mxu0 0.0
    %278 = vmatpush1.msra.mxu0 0.0
    %279 = vmatprep.subr.mxu0 0.0
    %280 = vmatpush1.msra.mxu0 0.0
    %281 = vmatprep.subr.mxu0 0.0
    %282 = vmatpush1.msra.mxu0 0.0
    %283 = vmatprep.subr.mxu0 0.0
    %284 = vmatpush1.msra.mxu0 0.0
    %285 = vmatprep.subr.mxu0 0.0
    %286 = vmatpush1.msra.mxu0 0.0
    %287 = vmatprep.subr.mxu0 0.0
    %288 = vmatpush1.msra.mxu0 0.0
    %289 = vmatprep.subr.mxu0 0.0
    %v290 = vand.u32 %v47, 4294901760
    %v291 = vsub.f32 %v47, %v290
    %v292 = vand.u32 %v291, 4294901760
    %v293 = vsub.f32 %v291, %v292
    %v294 = vand.u32 %v293, 4294901760
    %295 = vmatpush1.msra.mxu0 %v294
    %296 = vmatprep.subr.mxu0 0.0
    %297 = vmatpush2.msra.mxu0 0.0
    %298 = vmatprep.subr.mxu0 0.0
    %299 = vmatpush2.msra.mxu0 0.0
    %300 = vmatprep.subr.mxu0 0.0
    %301 = vmatpush2.msra.mxu0 0.0
    %302 = vmatprep.subr.mxu0 0.0
    %303 = vmatpush2.msra.mxu0 0.0
    %304 = vmatprep.subr.mxu0 0.0
    %305 = vmatpush2.msra.mxu0 0.0
    %306 = vmatprep.subr.mxu0 0.0
    %307 = vmatpush2.msra.mxu0 0.0
    %308 = vmatprep.subr.mxu0 0.0
    %309 = vmatpush2.msra.mxu0 0.0
    %310 = vmatprep.subr.mxu0 0.0
    %311 = vmatpush2.msra.mxu0 0.0
    %312 = vmatprep.subr.mxu0 0.0
    %313 = vmatpush2.msra.mxu0 0.0
    %314 = vmatprep.subr.mxu0 0.0
    %315 = vmatpush2.msra.mxu0 0.0
    %316 = vmatprep.subr.mxu0 0.0
    %317 = vmatpush2.msra.mxu0 0.0
    %318 = vmatprep.subr.mxu0 0.0
    %319 = vmatpush2.msra.mxu0 0.0
    %320 = vmatprep.subr.mxu0 0.0
    %321 = vmatpush2.msra.mxu0 0.0
    %322 = vmatprep.subr.mxu0 0.0
    %323 = vmatpush2.msra.mxu0 0.0
    %324 = vmatprep.subr.mxu0 0.0
    %325 = vmatpush2.msra.mxu0 0.0
    %326 = vmatprep.subr.mxu0 0.0
    %327 = vmatpush2.msra.mxu0 0.0
    %328 = vmatprep.mubr.f32.mxu0 0.0
    %v329 = vand.u32 %v90, 4294901760
    %330 = vmatmul.mubr.f32.gmra.mxu0 %v329
    %v331 = vpop.f32.mrf.mxu0
    %v332 = vadd.f32 %v186, %v331
    %v333 = vpop.f32.mrf.mxu0
    %334 = vmatprep.mubr.f32.mxu0 0.0
    %v335 = vand.u32 %v93, 4294901760
    %336 = vmatmul.mubr.f32.gmra.mxu0 %v335
    %v337 = vpop.f32.mrf.mxu0
    %v338 = vadd.f32 %v196, %v337
    %v339 = vpop.f32.mrf.mxu0
    %340 = vmatprep.mubr.f32.mxu0 0.0
    %v341 = vand.u32 %v96, 4294901760
    %342 = vmatmul.mubr.f32.gmra.mxu0 %v341
    %v343 = vpop.f32.mrf.mxu0
    %v344 = vadd.f32 %v206, %v343
    %v345 = vpop.f32.mrf.mxu0
    %346 = vmatprep.mubr.f32.mxu0 0.0
    %v347 = vand.u32 %v99, 4294901760
    %348 = vmatmul.mubr.f32.gmra.mxu0 %v347
    %v349 = vpop.f32.mrf.mxu0
    %v350 = vadd.f32 %v216, %v349
    %v351 = vpop.f32.mrf.mxu0
    %352 = vmatprep.mubr.f32.mxu0 0.0
    %v353 = vand.u32 %v102, 4294901760
    %354 = vmatmul.mubr.f32.gmra.mxu0 %v353
    %v355 = vpop.f32.mrf.mxu0
    %v356 = vadd.f32 %v226, %v355
    %v357 = vpop.f32.mrf.mxu0
    %358 = vmatprep.mubr.f32.mxu0 0.0
    %v359 = vand.u32 %v105, 4294901760
    %360 = vmatmul.mubr.f32.gmra.mxu0 %v359
    %v361 = vpop.f32.mrf.mxu0
    %v362 = vadd.f32 %v236, %v361
    %v363 = vpop.f32.mrf.mxu0
    %364 = vmatprep.mubr.f32.mxu0 0.0
    %v365 = vand.u32 %v108, 4294901760
    %366 = vmatmul.mubr.f32.gmra.mxu0 %v365
    %v367 = vpop.f32.mrf.mxu0
    %v368 = vadd.f32 %v246, %v367
    %v369 = vpop.f32.mrf.mxu0
    %370 = vmatprep.mubr.f32.mxu0 0.0
    %v371 = vand.u32 %v111, 4294901760
    %372 = vmatmul.mubr.f32.gmra.mxu0 %v371
    %v373 = vpop.f32.mrf.mxu0
    %v374 = vadd.f32 %v256, %v373
    %v375 = vpop.f32.mrf.mxu0
    %376 = vdwg.mxu0
    %377 = vmatprep.subr.mxu0 0.0
    %378 = vmatpush1.msra.mxu0 0.0
    %379 = vmatprep.subr.mxu0 0.0
    %380 = vmatpush1.msra.mxu0 0.0
    %381 = vmatprep.subr.mxu0 0.0
    %382 = vmatpush1.msra.mxu0 0.0
    %383 = vmatprep.subr.mxu0 0.0
    %384 = vmatpush1.msra.mxu0 0.0
    %385 = vmatprep.subr.mxu0 0.0
    %386 = vmatpush1.msra.mxu0 0.0
    %387 = vmatprep.subr.mxu0 0.0
    %388 = vmatpush1.msra.mxu0 0.0
    %389 = vmatprep.subr.mxu0 0.0
    %390 = vmatpush1.msra.mxu0 0.0
    %391 = vmatprep.subr.mxu0 0.0
    %392 = vmatpush1.msra.mxu0 0.0
    %393 = vmatprep.subr.mxu0 0.0
    %394 = vmatpush1.msra.mxu0 0.0
    %395 = vmatprep.subr.mxu0 0.0
    %396 = vmatpush1.msra.mxu0 0.0
    %397 = vmatprep.subr.mxu0 0.0
    %398 = vmatpush1.msra.mxu0 0.0
    %399 = vmatprep.subr.mxu0 0.0
    %400 = vmatpush1.msra.mxu0 0.0
    %401 = vmatprep.subr.mxu0 0.0
    %402 = vmatpush1.msra.mxu0 0.0
    %403 = vmatprep.subr.mxu0 0.0
    %404 = vmatpush1.msra.mxu0 0.0
    %405 = vmatprep.subr.mxu0 0.0
    %406 = vmatpush1.msra.mxu0 0.0
    %407 = vmatprep.subr.mxu0 0.0
    %v408 = vand.u32 %v47, 4294901760
    %v409 = vsub.f32 %v47, %v408
    %410 = vmatpush1.msra.mxu0 %v409
    %411 = vmatprep.subr.mxu0 0.0
    %412 = vmatpush2.msra.mxu0 0.0
    %413 = vmatprep.subr.mxu0 0.0
    %414 = vmatpush2.msra.mxu0 0.0
    %415 = vmatprep.subr.mxu0 0.0
    %416 = vmatpush2.msra.mxu0 0.0
    %417 = vmatprep.subr.mxu0 0.0
    %418 = vmatpush2.msra.mxu0 0.0
    %419 = vmatprep.subr.mxu0 0.0
    %420 = vmatpush2.msra.mxu0 0.0
    %421 = vmatprep.subr.mxu0 0.0
    %422 = vmatpush2.msra.mxu0 0.0
    %423 = vmatprep.subr.mxu0 0.0
    %424 = vmatpush2.msra.mxu0 0.0
    %425 = vmatprep.subr.mxu0 0.0
    %426 = vmatpush2.msra.mxu0 0.0
    %427 = vmatprep.subr.mxu0 0.0
    %428 = vmatpush2.msra.mxu0 0.0
    %429 = vmatprep.subr.mxu0 0.0
    %430 = vmatpush2.msra.mxu0 0.0
    %431 = vmatprep.subr.mxu0 0.0
    %432 = vmatpush2.msra.mxu0 0.0
    %433 = vmatprep.subr.mxu0 0.0
    %434 = vmatpush2.msra.mxu0 0.0
    %435 = vmatprep.subr.mxu0 0.0
    %436 = vmatpush2.msra.mxu0 0.0
    %437 = vmatprep.subr.mxu0 0.0
    %438 = vmatpush2.msra.mxu0 0.0
    %439 = vmatprep.subr.mxu0 0.0
    %440 = vmatpush2.msra.mxu0 0.0
    %441 = vmatprep.subr.mxu0 0.0
    %442 = vmatpush2.msra.mxu0 0.0
    %443 = vmatprep.mubr.f32.mxu0 0.0
    %v444 = vand.u32 %v90, 4294901760
    %v445 = vsub.f32 %v90, %v444
    %446 = vmatmul.mubr.f32.gmra.mxu0 %v445
    %v447 = vpop.f32.mrf.mxu0
    %v448 = vadd.f32 %v332, %v447
    %v449 = vpop.f32.mrf.mxu0
    %450 = vmatprep.mubr.f32.mxu0 0.0
    %v451 = vand.u32 %v93, 4294901760
    %v452 = vsub.f32 %v93, %v451
    %453 = vmatmul.mubr.f32.gmra.mxu0 %v452
    %v454 = vpop.f32.mrf.mxu0
    %v455 = vadd.f32 %v338, %v454
    %v456 = vpop.f32.mrf.mxu0
    %457 = vmatprep.mubr.f32.mxu0 0.0
    %v458 = vand.u32 %v96, 4294901760
    %v459 = vsub.f32 %v96, %v458
    %460 = vmatmul.mubr.f32.gmra.mxu0 %v459
    %v461 = vpop.f32.mrf.mxu0
    %v462 = vadd.f32 %v344, %v461
    %v463 = vpop.f32.mrf.mxu0
    %464 = vmatprep.mubr.f32.mxu0 0.0
    %v465 = vand.u32 %v99, 4294901760
    %v466 = vsub.f32 %v99, %v465
    %467 = vmatmul.mubr.f32.gmra.mxu0 %v466
    %v468 = vpop.f32.mrf.mxu0
    %v469 = vadd.f32 %v350, %v468
    %v470 = vpop.f32.mrf.mxu0
    %471 = vmatprep.mubr.f32.mxu0 0.0
    %v472 = vand.u32 %v102, 4294901760
    %v473 = vsub.f32 %v102, %v472
    %474 = vmatmul.mubr.f32.gmra.mxu0 %v473
    %v475 = vpop.f32.mrf.mxu0
    %v476 = vadd.f32 %v356, %v475
    %v477 = vpop.f32.mrf.mxu0
    %478 = vmatprep.mubr.f32.mxu0 0.0
    %v479 = vand.u32 %v105, 4294901760
    %v480 = vsub.f32 %v105, %v479
    %481 = vmatmul.mubr.f32.gmra.mxu0 %v480
    %v482 = vpop.f32.mrf.mxu0
    %v483 = vadd.f32 %v362, %v482
    %v484 = vpop.f32.mrf.mxu0
    %485 = vmatprep.mubr.f32.mxu0 0.0
    %v486 = vand.u32 %v108, 4294901760
    %v487 = vsub.f32 %v108, %v486
    %488 = vmatmul.mubr.f32.gmra.mxu0 %v487
    %v489 = vpop.f32.mrf.mxu0
    %v490 = vadd.f32 %v368, %v489
    %v491 = vpop.f32.mrf.mxu0
    %492 = vmatprep.mubr.f32.mxu0 0.0
    %v493 = vand.u32 %v111, 4294901760
    %v494 = vsub.f32 %v111, %v493
    %495 = vmatmul.mubr.f32.gmra.mxu0 %v494
    %v496 = vpop.f32.mrf.mxu0
    %v497 = vadd.f32 %v374, %v496
    %v498 = vpop.f32.mrf.mxu0
    %499 = vdwg.mxu0
    %500 = vmatprep.subr.mxu0 0.0
    %501 = vmatpush1.msra.mxu0 0.0
    %502 = vmatprep.subr.mxu0 0.0
    %503 = vmatpush1.msra.mxu0 0.0
    %504 = vmatprep.subr.mxu0 0.0
    %505 = vmatpush1.msra.mxu0 0.0
    %506 = vmatprep.subr.mxu0 0.0
    %507 = vmatpush1.msra.mxu0 0.0
    %508 = vmatprep.subr.mxu0 0.0
    %509 = vmatpush1.msra.mxu0 0.0
    %510 = vmatprep.subr.mxu0 0.0
    %511 = vmatpush1.msra.mxu0 0.0
    %512 = vmatprep.subr.mxu0 0.0
    %513 = vmatpush1.msra.mxu0 0.0
    %514 = vmatprep.subr.mxu0 0.0
    %515 = vmatpush1.msra.mxu0 0.0
    %516 = vmatprep.subr.mxu0 0.0
    %517 = vmatpush1.msra.mxu0 0.0
    %518 = vmatprep.subr.mxu0 0.0
    %519 = vmatpush1.msra.mxu0 0.0
    %520 = vmatprep.subr.mxu0 0.0
    %521 = vmatpush1.msra.mxu0 0.0
    %522 = vmatprep.subr.mxu0 0.0
    %523 = vmatpush1.msra.mxu0 0.0
    %524 = vmatprep.subr.mxu0 0.0
    %525 = vmatpush1.msra.mxu0 0.0
    %526 = vmatprep.subr.mxu0 0.0
    %527 = vmatpush1.msra.mxu0 0.0
    %528 = vmatprep.subr.mxu0 0.0
    %529 = vmatpush1.msra.mxu0 0.0
    %530 = vmatprep.subr.mxu0 0.0
    %v531 = vand.u32 %v47, 4294901760
    %532 = vmatpush1.msra.mxu0 %v531
    %533 = vmatprep.subr.mxu0 0.0
    %534 = vmatpush2.msra.mxu0 0.0
    %535 = vmatprep.subr.mxu0 0.0
    %536 = vmatpush2.msra.mxu0 0.0
    %537 = vmatprep.subr.mxu0 0.0
    %538 = vmatpush2.msra.mxu0 0.0
    %539 = vmatprep.subr.mxu0 0.0
    %540 = vmatpush2.msra.mxu0 0.0
    %541 = vmatprep.subr.mxu0 0.0
    %542 = vmatpush2.msra.mxu0 0.0
    %543 = vmatprep.subr.mxu0 0.0
    %544 = vmatpush2.msra.mxu0 0.0
    %545 = vmatprep.subr.mxu0 0.0
    %546 = vmatpush2.msra.mxu0 0.0
    %547 = vmatprep.subr.mxu0 0.0
    %548 = vmatpush2.msra.mxu0 0.0
    %549 = vmatprep.subr.mxu0 0.0
    %550 = vmatpush2.msra.mxu0 0.0
    %551 = vmatprep.subr.mxu0 0.0
    %552 = vmatpush2.msra.mxu0 0.0
    %553 = vmatprep.subr.mxu0 0.0
    %554 = vmatpush2.msra.mxu0 0.0
    %555 = vmatprep.subr.mxu0 0.0
    %556 = vmatpush2.msra.mxu0 0.0
    %557 = vmatprep.subr.mxu0 0.0
    %558 = vmatpush2.msra.mxu0 0.0
    %559 = vmatprep.subr.mxu0 0.0
    %560 = vmatpush2.msra.mxu0 0.0
    %561 = vmatprep.subr.mxu0 0.0
    %562 = vmatpush2.msra.mxu0 0.0
    %563 = vmatprep.subr.mxu0 0.0
    %564 = vmatpush2.msra.mxu0 0.0
    %565 = vmatprep.mubr.f32.mxu0 0.0
    %v566 = vand.u32 %v90, 4294901760
    %v567 = vsub.f32 %v90, %v566
    %v568 = vand.u32 %v567, 4294901760
    %569 = vmatmul.mubr.f32.gmra.mxu0 %v568
    %v570 = vpop.f32.mrf.mxu0
    %v571 = vadd.f32 %v448, %v570
    %v572 = vpop.f32.mrf.mxu0
    %573 = vmatprep.mubr.f32.mxu0 0.0
    %v574 = vand.u32 %v93, 4294901760
    %v575 = vsub.f32 %v93, %v574
    %v576 = vand.u32 %v575, 4294901760
    %577 = vmatmul.mubr.f32.gmra.mxu0 %v576
    %v578 = vpop.f32.mrf.mxu0
    %v579 = vadd.f32 %v455, %v578
    %v580 = vpop.f32.mrf.mxu0
    %581 = vmatprep.mubr.f32.mxu0 0.0
    %v582 = vand.u32 %v96, 4294901760
    %v583 = vsub.f32 %v96, %v582
    %v584 = vand.u32 %v583, 4294901760
    %585 = vmatmul.mubr.f32.gmra.mxu0 %v584
    %v586 = vpop.f32.mrf.mxu0
    %v587 = vadd.f32 %v462, %v586
    %v588 = vpop.f32.mrf.mxu0
    %589 = vmatprep.mubr.f32.mxu0 0.0
    %v590 = vand.u32 %v99, 4294901760
    %v591 = vsub.f32 %v99, %v590
    %v592 = vand.u32 %v591, 4294901760
    %593 = vmatmul.mubr.f32.gmra.mxu0 %v592
    %v594 = vpop.f32.mrf.mxu0
    %v595 = vadd.f32 %v469, %v594
    %v596 = vpop.f32.mrf.mxu0
    %597 = vmatprep.mubr.f32.mxu0 0.0
    %v598 = vand.u32 %v102, 4294901760
    %v599 = vsub.f32 %v102, %v598
    %v600 = vand.u32 %v599, 4294901760
    %601 = vmatmul.mubr.f32.gmra.mxu0 %v600
    %v602 = vpop.f32.mrf.mxu0
    %v603 = vadd.f32 %v476, %v602
    %v604 = vpop.f32.mrf.mxu0
    %605 = vmatprep.mubr.f32.mxu0 0.0
    %v606 = vand.u32 %v105, 4294901760
    %v607 = vsub.f32 %v105, %v606
    %v608 = vand.u32 %v607, 4294901760
    %609 = vmatmul.mubr.f32.gmra.mxu0 %v608
    %v610 = vpop.f32.mrf.mxu0
    %v611 = vadd.f32 %v483, %v610
    %v612 = vpop.f32.mrf.mxu0
    %613 = vmatprep.mubr.f32.mxu0 0.0
    %v614 = vand.u32 %v108, 4294901760
    %v615 = vsub.f32 %v108, %v614
    %v616 = vand.u32 %v615, 4294901760
    %617 = vmatmul.mubr.f32.gmra.mxu0 %v616
    %v618 = vpop.f32.mrf.mxu0
    %v619 = vadd.f32 %v490, %v618
    %v620 = vpop.f32.mrf.mxu0
    %621 = vmatprep.mubr.f32.mxu0 0.0
    %v622 = vand.u32 %v111, 4294901760
    %v623 = vsub.f32 %v111, %v622
    %v624 = vand.u32 %v623, 4294901760
    %625 = vmatmul.mubr.f32.gmra.mxu0 %v624
    %v626 = vpop.f32.mrf.mxu0
    %v627 = vadd.f32 %v497, %v626
    %v628 = vpop.f32.mrf.mxu0
    %629 = vdwg.mxu0
    %630 = vmatprep.subr.mxu0 0.0
    %631 = vmatpush1.msra.mxu0 0.0
    %632 = vmatprep.subr.mxu0 0.0
    %633 = vmatpush1.msra.mxu0 0.0
    %634 = vmatprep.subr.mxu0 0.0
    %635 = vmatpush1.msra.mxu0 0.0
    %636 = vmatprep.subr.mxu0 0.0
    %637 = vmatpush1.msra.mxu0 0.0
    %638 = vmatprep.subr.mxu0 0.0
    %639 = vmatpush1.msra.mxu0 0.0
    %640 = vmatprep.subr.mxu0 0.0
    %641 = vmatpush1.msra.mxu0 0.0
    %642 = vmatprep.subr.mxu0 0.0
    %643 = vmatpush1.msra.mxu0 0.0
    %644 = vmatprep.subr.mxu0 0.0
    %645 = vmatpush1.msra.mxu0 0.0
    %646 = vmatprep.subr.mxu0 0.0
    %647 = vmatpush1.msra.mxu0 0.0
    %648 = vmatprep.subr.mxu0 0.0
    %649 = vmatpush1.msra.mxu0 0.0
    %650 = vmatprep.subr.mxu0 0.0
    %651 = vmatpush1.msra.mxu0 0.0
    %652 = vmatprep.subr.mxu0 0.0
    %653 = vmatpush1.msra.mxu0 0.0
    %654 = vmatprep.subr.mxu0 0.0
    %655 = vmatpush1.msra.mxu0 0.0
    %656 = vmatprep.subr.mxu0 0.0
    %657 = vmatpush1.msra.mxu0 0.0
    %658 = vmatprep.subr.mxu0 0.0
    %659 = vmatpush1.msra.mxu0 0.0
    %660 = vmatprep.subr.mxu0 0.0
    %v661 = vand.u32 %v47, 4294901760
    %v662 = vsub.f32 %v47, %v661
    %v663 = vand.u32 %v662, 4294901760
    %664 = vmatpush1.msra.mxu0 %v663
    %665 = vmatprep.subr.mxu0 0.0
    %666 = vmatpush2.msra.mxu0 0.0
    %667 = vmatprep.subr.mxu0 0.0
    %668 = vmatpush2.msra.mxu0 0.0
    %669 = vmatprep.subr.mxu0 0.0
    %670 = vmatpush2.msra.mxu0 0.0
    %671 = vmatprep.subr.mxu0 0.0
    %672 = vmatpush2.msra.mxu0 0.0
    %673 = vmatprep.subr.mxu0 0.0
    %674 = vmatpush2.msra.mxu0 0.0
    %675 = vmatprep.subr.mxu0 0.0
    %676 = vmatpush2.msra.mxu0 0.0
    %677 = vmatprep.subr.mxu0 0.0
    %678 = vmatpush2.msra.mxu0 0.0
    %679 = vmatprep.subr.mxu0 0.0
    %680 = vmatpush2.msra.mxu0 0.0
    %681 = vmatprep.subr.mxu0 0.0
    %682 = vmatpush2.msra.mxu0 0.0
    %683 = vmatprep.subr.mxu0 0.0
    %684 = vmatpush2.msra.mxu0 0.0
    %685 = vmatprep.subr.mxu0 0.0
    %686 = vmatpush2.msra.mxu0 0.0
    %687 = vmatprep.subr.mxu0 0.0
    %688 = vmatpush2.msra.mxu0 0.0
    %689 = vmatprep.subr.mxu0 0.0
    %690 = vmatpush2.msra.mxu0 0.0
    %691 = vmatprep.subr.mxu0 0.0
    %692 = vmatpush2.msra.mxu0 0.0
    %693 = vmatprep.subr.mxu0 0.0
    %694 = vmatpush2.msra.mxu0 0.0
    %695 = vmatprep.subr.mxu0 0.0
    %696 = vmatpush2.msra.mxu0 0.0
    %697 = vmatprep.mubr.f32.mxu0 0.0
    %v698 = vand.u32 %v90, 4294901760
    %699 = vmatmul.mubr.f32.gmra.mxu0 %v698
    %v700 = vpop.f32.mrf.mxu0
    %v701 = vadd.f32 %v571, %v700
    %v702 = vpop.f32.mrf.mxu0
    %703 = vmatprep.mubr.f32.mxu0 0.0
    %v704 = vand.u32 %v93, 4294901760
    %705 = vmatmul.mubr.f32.gmra.mxu0 %v704
    %v706 = vpop.f32.mrf.mxu0
    %v707 = vadd.f32 %v579, %v706
    %v708 = vpop.f32.mrf.mxu0
    %709 = vmatprep.mubr.f32.mxu0 0.0
    %v710 = vand.u32 %v96, 4294901760
    %711 = vmatmul.mubr.f32.gmra.mxu0 %v710
    %v712 = vpop.f32.mrf.mxu0
    %v713 = vadd.f32 %v587, %v712
    %v714 = vpop.f32.mrf.mxu0
    %715 = vmatprep.mubr.f32.mxu0 0.0
    %v716 = vand.u32 %v99, 4294901760
    %717 = vmatmul.mubr.f32.gmra.mxu0 %v716
    %v718 = vpop.f32.mrf.mxu0
    %v719 = vadd.f32 %v595, %v718
    %v720 = vpop.f32.mrf.mxu0
    %721 = vmatprep.mubr.f32.mxu0 0.0
    %v722 = vand.u32 %v102, 4294901760
    %723 = vmatmul.mubr.f32.gmra.mxu0 %v722
    %v724 = vpop.f32.mrf.mxu0
    %v725 = vadd.f32 %v603, %v724
    %v726 = vpop.f32.mrf.mxu0
    %727 = vmatprep.mubr.f32.mxu0 0.0
    %v728 = vand.u32 %v105, 4294901760
    %729 = vmatmul.mubr.f32.gmra.mxu0 %v728
    %v730 = vpop.f32.mrf.mxu0
    %v731 = vadd.f32 %v611, %v730
    %v732 = vpop.f32.mrf.mxu0
    %733 = vmatprep.mubr.f32.mxu0 0.0
    %v734 = vand.u32 %v108, 4294901760
    %735 = vmatmul.mubr.f32.gmra.mxu0 %v734
    %v736 = vpop.f32.mrf.mxu0
    %v737 = vadd.f32 %v619, %v736
    %v738 = vpop.f32.mrf.mxu0
    %739 = vmatprep.mubr.f32.mxu0 0.0
    %v740 = vand.u32 %v111, 4294901760
    %741 = vmatmul.mubr.f32.gmra.mxu0 %v740
    %v742 = vpop.f32.mrf.mxu0
    %v743 = vadd.f32 %v627, %v742
    %v744 = vpop.f32.mrf.mxu0
    %745 = vdwg.mxu0
    %746 = vmatprep.subr.mxu0 0.0
    %747 = vmatpush1.msra.mxu0 0.0
    %748 = vmatprep.subr.mxu0 0.0
    %749 = vmatpush1.msra.mxu0 0.0
    %750 = vmatprep.subr.mxu0 0.0
    %751 = vmatpush1.msra.mxu0 0.0
    %752 = vmatprep.subr.mxu0 0.0
    %753 = vmatpush1.msra.mxu0 0.0
    %754 = vmatprep.subr.mxu0 0.0
    %755 = vmatpush1.msra.mxu0 0.0
    %756 = vmatprep.subr.mxu0 0.0
    %757 = vmatpush1.msra.mxu0 0.0
    %758 = vmatprep.subr.mxu0 0.0
    %759 = vmatpush1.msra.mxu0 0.0
    %760 = vmatprep.subr.mxu0 0.0
    %761 = vmatpush1.msra.mxu0 0.0
    %762 = vmatprep.subr.mxu0 0.0
    %763 = vmatpush1.msra.mxu0 0.0
    %764 = vmatprep.subr.mxu0 0.0
    %765 = vmatpush1.msra.mxu0 0.0
    %766 = vmatprep.subr.mxu0 0.0
    %767 = vmatpush1.msra.mxu0 0.0
    %768 = vmatprep.subr.mxu0 0.0
    %769 = vmatpush1.msra.mxu0 0.0
    %770 = vmatprep.subr.mxu0 0.0
    %771 = vmatpush1.msra.mxu0 0.0
    %772 = vmatprep.subr.mxu0 0.0
    %773 = vmatpush1.msra.mxu0 0.0
    %774 = vmatprep.subr.mxu0 0.0
    %775 = vmatpush1.msra.mxu0 0.0
    %776 = vmatprep.subr.mxu0 0.0
    %v777 = vand.u32 %v47, 4294901760
    %778 = vmatpush1.msra.mxu0 %v777
    %779 = vmatprep.subr.mxu0 0.0
    %780 = vmatpush2.msra.mxu0 0.0
    %781 = vmatprep.subr.mxu0 0.0
    %782 = vmatpush2.msra.mxu0 0.0
    %783 = vmatprep.subr.mxu0 0.0
    %784 = vmatpush2.msra.mxu0 0.0
    %785 = vmatprep.subr.mxu0 0.0
    %786 = vmatpush2.msra.mxu0 0.0
    %787 = vmatprep.subr.mxu0 0.0
    %788 = vmatpush2.msra.mxu0 0.0
    %789 = vmatprep.subr.mxu0 0.0
    %790 = vmatpush2.msra.mxu0 0.0
    %791 = vmatprep.subr.mxu0 0.0
    %792 = vmatpush2.msra.mxu0 0.0
    %793 = vmatprep.subr.mxu0 0.0
    %794 = vmatpush2.msra.mxu0 0.0
    %795 = vmatprep.subr.mxu0 0.0
    %796 = vmatpush2.msra.mxu0 0.0
    %797 = vmatprep.subr.mxu0 0.0
    %798 = vmatpush2.msra.mxu0 0.0
    %799 = vmatprep.subr.mxu0 0.0
    %800 = vmatpush2.msra.mxu0 0.0
    %801 = vmatprep.subr.mxu0 0.0
    %802 = vmatpush2.msra.mxu0 0.0
    %803 = vmatprep.subr.mxu0 0.0
    %804 = vmatpush2.msra.mxu0 0.0
    %805 = vmatprep.subr.mxu0 0.0
    %806 = vmatpush2.msra.mxu0 0.0
    %807 = vmatprep.subr.mxu0 0.0
    %808 = vmatpush2.msra.mxu0 0.0
    %809 = vmatprep.subr.mxu0 0.0
    %810 = vmatpush2.msra.mxu0 0.0
    %811 = vmatprep.mubr.f32.mxu0 0.0
    %v812 = vand.u32 %v90, 4294901760
    %813 = vmatmul.mubr.f32.gmra.mxu0 %v812
    %v814 = vpop.f32.mrf.mxu0
    %v815 = vadd.f32 %v701, %v814
    %v816 = vpop.f32.mrf.mxu0
    %817 = vmatprep.mubr.f32.mxu0 0.0
    %v818 = vand.u32 %v93, 4294901760
    %819 = vmatmul.mubr.f32.gmra.mxu0 %v818
    %v820 = vpop.f32.mrf.mxu0
    %v821 = vadd.f32 %v707, %v820
    %v822 = vpop.f32.mrf.mxu0
    %823 = vmatprep.mubr.f32.mxu0 0.0
    %v824 = vand.u32 %v96, 4294901760
    %825 = vmatmul.mubr.f32.gmra.mxu0 %v824
    %v826 = vpop.f32.mrf.mxu0
    %v827 = vadd.f32 %v713, %v826
    %v828 = vpop.f32.mrf.mxu0
    %829 = vmatprep.mubr.f32.mxu0 0.0
    %v830 = vand.u32 %v99, 4294901760
    %831 = vmatmul.mubr.f32.gmra.mxu0 %v830
    %v832 = vpop.f32.mrf.mxu0
    %v833 = vadd.f32 %v719, %v832
    %v834 = vpop.f32.mrf.mxu0
    %835 = vmatprep.mubr.f32.mxu0 0.0
    %v836 = vand.u32 %v102, 4294901760
    %837 = vmatmul.mubr.f32.gmra.mxu0 %v836
    %v838 = vpop.f32.mrf.mxu0
    %v839 = vadd.f32 %v725, %v838
    %v840 = vpop.f32.mrf.mxu0
    %841 = vmatprep.mubr.f32.mxu0 0.0
    %v842 = vand.u32 %v105, 4294901760
    %843 = vmatmul.mubr.f32.gmra.mxu0 %v842
    %v844 = vpop.f32.mrf.mxu0
    %v845 = vadd.f32 %v731, %v844
    %v846 = vpop.f32.mrf.mxu0
    %847 = vmatprep.mubr.f32.mxu0 0.0
    %v848 = vand.u32 %v108, 4294901760
    %849 = vmatmul.mubr.f32.gmra.mxu0 %v848
    %v850 = vpop.f32.mrf.mxu0
    %v851 = vadd.f32 %v737, %v850
    %v852 = vpop.f32.mrf.mxu0
    %853 = vmatprep.mubr.f32.mxu0 0.0
    %v854 = vand.u32 %v111, 4294901760
    %855 = vmatmul.mubr.f32.gmra.mxu0 %v854
    %v856 = vpop.f32.mrf.mxu0
    %v857 = vadd.f32 %v743, %v856
    %v858 = vpop.f32.mrf.mxu0
    %859 = vdwg.mxu0
    %v860 = vmax.f32 %v815, 0.0
    %v861 = vmax.f32 %v821, 0.0
    %v862 = vmax.f32 %v827, 0.0
    %v863 = vmax.f32 %v833, 0.0
    %v864 = vmax.f32 %v839, 0.0
    %v865 = vmax.f32 %v845, 0.0
    %v866 = vmax.f32 %v851, 0.0
    %v867 = vmax.f32 %v857, 0.0
    %869 = vset.pattern.permute.xlu0 0
    %870 = vperm.xlu0 %869, %v38
    %v871 = vpop.permute.xlu0 %870
    %874 = vset.pattern.permute.xlu0 0
    %875 = vperm.xlu0 %874, %v39
    %v876 = vpop.permute.xlu0 %875
    %879 = vset.pattern.permute.xlu0 0
    %880 = vperm.xlu0 %879, %v40
    %v881 = vpop.permute.xlu0 %880
    %884 = vset.pattern.permute.xlu0 0
    %885 = vperm.xlu0 %884, %v41
    %v886 = vpop.permute.xlu0 %885
    %889 = vset.pattern.permute.xlu0 0
    %890 = vperm.xlu0 %889, %v42
    %v891 = vpop.permute.xlu0 %890
    %894 = vset.pattern.permute.xlu0 0
    %895 = vperm.xlu0 %894, %v43
    %v896 = vpop.permute.xlu0 %895
    %899 = vset.pattern.permute.xlu0 0
    %900 = vperm.xlu0 %899, %v44
    %v901 = vpop.permute.xlu0 %900
    %904 = vset.pattern.permute.xlu0 0
    %905 = vperm.xlu0 %904, %v45
    %v906 = vpop.permute.xlu0 %905
    %v908 = vmul.f32 %v860, %v871
    %v909 = vmul.f32 %v861, %v876
    %v910 = vmul.f32 %v862, %v881
    %v911 = vmul.f32 %v863, %v886
    %v912 = vmul.f32 %v864, %v891
    %v913 = vmul.f32 %v865, %v896
    %v914 = vmul.f32 %v866, %v901
    %v915 = vmul.f32 %v867, %v906
    %v916 = vadd.f32 %v908, %v909
    %v917 = vadd.f32 %v916, %v910
    %v918 = vadd.f32 %v917, %v911
    %v919 = vadd.f32 %v918, %v912
    %v920 = vadd.f32 %v919, %v913
    %v921 = vadd.f32 %v920, %v914
    %v922 = vadd.f32 %v921, %v915
    %v923 = vrot.slane %v922, 4
    %v924 = vadd.f32 %v922, %v923
    %v925 = vrot.slane %v924, 2
    %v926 = vadd.f32 %v924, %v925
    %v927 = vrot.slane %v926, 1
    %v928 = vadd.f32 %v926, %v927
    %v929 = vstv %s46
    %v930 = vadd.f32 %v928, %v929
    %931 = vst [vmem:[#allocation3] sm:$0x1] %v930
    // Predicated region
    $region22: #{tpu_custom_call.1} parent=1 // pred_check
      _
    $region23: #{tpu_custom_call.1} parent=1 // pred_check_branch
      %933 = sbr.rel (0) target = $region25
    $region24: #{tpu_custom_call.1} parent=1 // pred_region
      %s935 = ssub.s32 16, 16
      %936 = vsyncadd [#allocation4], %s935
      %s938 = sshll.u32 [#allocation3], 4
      %s939 = int_to_ptr.vmem [resolvable:$true] %s938
      %941 = dma.vmem_to_hbm [thread:$0]  %s939, 16, %s5, [#allocation4]
    $region25: #{tpu_custom_call.1} parent=1 // pred_fallthru
      _
    // Predicated region
    $region26: #{tpu_custom_call.1} parent=1 // pred_check
      _
    $region27: #{tpu_custom_call.1} parent=1 // pred_check_branch
      %943 = sbr.rel (0) target = $region29
    $region28: #{tpu_custom_call.1} parent=1 // pred_region
      %944 = dma.done [#allocation4], 16
    $region29: #{tpu_custom_call.1} parent=1 // pred_fallthru
      _
    %945 = vsyncpa [#allocation4], 1

</llo_original>
